<compile_context>
chip_gen: v5e
topology: v5e:2x2
jax: 0.10.0
libtpu: 0.0.40
codegen_flags: <defaults>
</compile_context>

<pallas_src>
import functools

import jax
import jax.numpy as jnp
import numpy as np
from jax.experimental import pallas as pl
from jax.experimental.pallas import tpu as pltpu

BN_EPS = 1e-5


def coordpool_kernel(x_ref, p_ref, w1_ref, b1_ref, w2_ref, b2_ref, o_ref, *, h):
    """x_ref: (TB, Cp, H*W); o_ref: (TB, OUPp, H+W). Everything f32 in VMEM.

    One grid step = 3 MXU matmuls (pooling, block-diag conv1, block-diag
    conv_h/conv_w) + h_swish + a single select + a single block store.
    """
    tb, c_p, hw = x_ref.shape
    oup_p = o_ref.shape[1]
    s = o_ref.shape[2]

    # (TB, Cp, HW) -> (TB*Cp, HW): free collapse (Cp is a multiple of 8).
    x2d = x_ref[...].reshape(tb * c_p, hw)

    # Coordinate pooling (avg over W and over H) for the whole batch tile
    # as one MXU matmul against the constant averaging matrix P.
    y = jnp.dot(x2d, p_ref[...], preferred_element_type=jnp.float32)     # (TB*Cp, S)

    # conv1 (1x1, BN folded) via block-diagonal weights, then h_swish.
    z = jnp.dot(w1_ref[...], y, preferred_element_type=jnp.float32) + b1_ref[...]  # (TB*mip, S)
    z = z * jnp.clip(z + 3.0, 0.0, 6.0) * (1.0 / 6.0)

    # Stacked conv_h / conv_w via block-diagonal weights.
    r = jnp.dot(w2_ref[...], z, preferred_element_type=jnp.float32) + b2_ref[...]  # (TB*2*oup, S)
    r = r.reshape(tb, 2 * oup_p, s)

    # Select per output column: conv_h rows for columns < h, conv_w rows otherwise.
    sel_h = jax.lax.broadcasted_iota(jnp.int32, (tb, oup_p, s), 2) < h
    o_ref[...] = jnp.where(sel_h, r[:, :oup_p, :], r[:, oup_p:, :]).astype(o_ref.dtype)


def _round_up(v, m):
    return ((v + m - 1) // m) * m


def _pad2(a, rows, cols):
    r, c = a.shape
    return jnp.pad(a, ((0, rows - r), (0, cols - c)))


def _pick_batch_tile(n, c_p, mip_p, oup_p, hw, s, vmem_budget, max_tb):
    """Largest divisor of n <= max_tb whose full VMEM footprint (input/output
    double-buffers + resident constants incl. block-diag weights) fits the budget."""
    best = 1
    itm = 4  # f32
    for tb in range(1, max(1, min(n, max_tb)) + 1):
        if n % tb != 0:
            continue
        usage = (2 * tb * c_p * hw                       # input tile, double-buffered
                 + 2 * tb * oup_p * s                    # output tile, double-buffered
                 + 2 * hw * s                            # P
                 + 2 * (tb * mip_p) * (tb * c_p)         # W1 block-diag
                 + 2 * (tb * 2 * oup_p) * (tb * mip_p)   # W2 block-diag
                 + 2 * tb * (mip_p + 2 * oup_p)          # biases
                 ) * itm
        if usage <= vmem_budget:
            best = tb
    return best


def _full_spec(a):
    nd = a.ndim
    return pl.BlockSpec(a.shape, lambda i, _nd=nd: (0,) * _nd)


def cross_keypoints_decoder(x, params):
    """x: (N, C, H, W) fp32 NCHW. Returns (N, oup, H+W, 1) like the PyTorch module."""
    n, c, h, w = x.shape
    w1, b1, g, beta, mean, var, wh, bh, ww, bw = params
    mip = w1.shape[0]
    oup = wh.shape[0]
    s = h + w
    hw = h * w

    # Pad channel-like dims to multiples of 8 so all in-kernel reshapes/slices
    # stay on sublane-tile boundaries (no hidden relayout copies).
    c_p = _round_up(c, 8)
    mip_p = _round_up(mip, 8)
    oup_p = _round_up(oup, 8)

    # ---- host-side folding / packing (cheap, runs once per call) ----
    scale = g * jax.lax.rsqrt(var + BN_EPS)              # (mip, 1)
    w1f = _pad2(w1 * scale, mip_p, c_p)                  # conv1 weight with BN folded
    b1f = _pad2((b1 - mean) * scale + beta, mip_p, 1)    # conv1 bias with BN folded
    w2 = jnp.concatenate([_pad2(wh, oup_p, mip_p),
                          _pad2(ww, oup_p, mip_p)], axis=0)   # (2*oup_p, mip_p)
    b2 = jnp.concatenate([_pad2(bh, oup_p, 1),
                          _pad2(bw, oup_p, 1)], axis=0)       # (2*oup_p, 1)

    # Constant averaging matrix P: (H*W, H+W).
    #   column j < h : 1/W at rows p where p // W == j     (mean over W)
    #   column j >= h: 1/H at rows p where p %  W == j - h (mean over H)
    row_i = np.repeat(np.arange(h), w)
    col_k = np.tile(np.arange(w), h)
    P = np.zeros((hw, s), np.float32)
    P[np.arange(hw), row_i] = 1.0 / w
    P[np.arange(hw), h + col_k] = 1.0 / h
    P = jnp.asarray(P)

    # Lane-dense (Cp, H*W) tiles, channel-padded with zeros.
    x_flat = x.reshape(n, c, hw).astype(jnp.float32)
    if c_p != c:
        x_flat = jnp.pad(x_flat, ((0, 0), (0, c_p - c), (0, 0)))

    # VMEM budget / scoped limit (safe on v5e/v6e/v7x).
    try:
        vmem_cap = int(pltpu.get_tpu_info().vmem_capacity_bytes)
    except Exception:
        vmem_cap = 64 << 20
    vmem_limit = min(32 << 20, vmem_cap // 2)

    max_tb = max(1, 256 // c_p)  # target TB*Cp ~= 256 MXU rows
    tb = _pick_batch_tile(n, c_p, mip_p, oup_p, hw, s,
                          vmem_budget=(3 * vmem_limit) // 4, max_tb=max_tb)
    grid = (n // tb,)

    # Block-diagonal stacked weights so the whole batch tile is 3 matmuls.
    eye_tb = jnp.eye(tb, dtype=jnp.float32)
    w1_bd = jnp.kron(eye_tb, w1f)                        # (tb*mip_p, tb*c_p)
    b1_bd = jnp.tile(b1f, (tb, 1))                       # (tb*mip_p, 1)
    w2_bd = jnp.kron(eye_tb, w2)                         # (tb*2*oup_p, tb*mip_p)
    b2_bd = jnp.tile(b2, (tb, 1))                        # (tb*2*oup_p, 1)

    flops = int(2 * n * s * (c * hw + mip * c + 2 * oup * mip))
    bytes_accessed = int(4 * (n * c_p * hw + n * oup_p * s + hw * s
                              + w1_bd.size + b1_bd.size + w2_bd.size + b2_bd.size))

    out = pl.pallas_call(
        functools.partial(coordpool_kernel, h=h),
        out_shape=jax.ShapeDtypeStruct((n, oup_p, s), jnp.float32),
        grid_spec=pltpu.PrefetchScalarGridSpec(
            num_scalar_prefetch=0,
            grid=grid,
            in_specs=[
                pl.BlockSpec((tb, c_p, hw), lambda i: (i, 0, 0)),
                _full_spec(P), _full_spec(w1_bd), _full_spec(b1_bd),
                _full_spec(w2_bd), _full_spec(b2_bd),
            ],
            out_specs=pl.BlockSpec((tb, oup_p, s), lambda i: (i, 0, 0)),
        ),
        compiler_params=pltpu.CompilerParams(
            dimension_semantics=("parallel",),
            vmem_limit_bytes=vmem_limit),
        cost_estimate=pl.CostEstimate(flops=flops, transcendentals=0,
                                      bytes_accessed=bytes_accessed),
    )(x_flat, P, w1_bd, b1_bd, w2_bd, b2_bd)

    return out[:, :oup, :, None]  # (N, oup, H+W, 1)


def init_params(key, in_dim):
    """Deterministic synthetic parameters matching CoordPool(in_dim, in_dim)."""
    oup = in_dim
    mip = max(8, oup)
    ks = jax.random.split(key, 8)
    scale = 0.1
    w1 = scale * jax.random.normal(ks[0], (mip, in_dim), jnp.float32)
    b1 = scale * jax.random.normal(ks[1], (mip, 1), jnp.float32)
    gamma = 1.0 + scale * jax.random.normal(ks[2], (mip, 1), jnp.float32)
    beta = scale * jax.random.normal(ks[3], (mip, 1), jnp.float32)
    mean = scale * jax.random.normal(ks[4], (mip, 1), jnp.float32)
    var = jnp.abs(1.0 + scale * jax.random.normal(ks[5], (mip, 1), jnp.float32))
    wh = scale * jax.random.normal(ks[6], (oup, mip), jnp.float32)
    bh = scale * jax.random.normal(ks[7], (oup, 1), jnp.float32)
    ww = scale * jax.random.normal(jax.random.fold_in(key, 101), (oup, mip), jnp.float32)
    bw = scale * jax.random.normal(jax.random.fold_in(key, 102), (oup, 1), jnp.float32)
    return (w1, b1, gamma, beta, mean, var, wh, bh, ww, bw)


def reference_forward(x, params):
    """Pure-JAX reference mirroring the PyTorch forward (BN in inference mode)."""
    w1, b1, g, beta, mean, var, wh, bh, ww, bw = params
    n, c, h, w = x.shape
    x_h = jnp.mean(x, axis=3)                              # (n, c, h)
    x_w = jnp.mean(x, axis=2)                              # (n, c, w)
    y = jnp.concatenate([x_h, x_w], axis=2)                # (n, c, h+w)
    z = jnp.einsum('mc,ncs->nms', w1, y) + b1[None]        # (n, mip, h+w)
    z = (z - mean[None]) / jnp.sqrt(var[None] + BN_EPS) * g[None] + beta[None]
    z = z * jnp.clip(z + 3.0, 0.0, 6.0) / 6.0
    zh, zw = z[:, :, :h], z[:, :, h:]
    a_h = jnp.einsum('om,nms->nos', wh, zh) + bh[None]
    a_w = jnp.einsum('om,nms->nos', ww, zw) + bw[None]
    return jnp.concatenate([a_h, a_w], axis=2)[..., None]  # (n, oup, h+w, 1)


if __name__ == "__main__":
    key = jax.random.PRNGKey(0)
    n, in_dim, h, w = 2, 16, 16, 16        # in_dim == points_num (module asserts this)
    kx, kp = jax.random.split(key)
    x = jax.random.normal(kx, (n, in_dim, h, w), jnp.float32)
    params = init_params(kp, in_dim)

    out = cross_keypoints_decoder(x, params)
    out = jax.block_until_ready(out)

    ref = reference_forward(x, params)
    assert out.shape == (n, in_dim, h + w, 1), out.shape
    np.testing.assert_allclose(np.asarray(out), np.asarray(ref), rtol=1e-4, atol=1e-4)
    print("KERNEL_OK")
</pallas_src>

<mosaic_0001>
module attributes {stable_mosaic.version = 11 : i64} {
  func.func @coordpool_kernel(%arg0: i32, %arg1: memref<2x16x256xf32, #tpu.memory_space<vmem>>, %arg2: memref<256x32xf32, #tpu.memory_space<vmem>>, %arg3: memref<32x32xf32, #tpu.memory_space<vmem>>, %arg4: memref<32x1xf32, #tpu.memory_space<vmem>>, %arg5: memref<64x32xf32, #tpu.memory_space<vmem>>, %arg6: memref<64x1xf32, #tpu.memory_space<vmem>>, %arg7: memref<2x16x32xf32, #tpu.memory_space<vmem>>) attributes {dimension_semantics = [#tpu.dimension_semantics<parallel>], iteration_bounds = array<i64: 1>, scalar_prefetch = 0 : i64, scratch_operands = 0 : i64, tpu.core_type = #tpu.core_type<tc>, window_params = [{transform_indices = @transform_0, window_bounds = array<i64: 2, 16, 256>}, {pipeline_mode = #tpu.pipeline_mode<synchronous>, transform_indices = @transform_1, window_bounds = array<i64: 256, 32>}, {pipeline_mode = #tpu.pipeline_mode<synchronous>, transform_indices = @transform_2, window_bounds = array<i64: 32, 32>}, {pipeline_mode = #tpu.pipeline_mode<synchronous>, transform_indices = @transform_3, window_bounds = array<i64: 32, 1>}, {pipeline_mode = #tpu.pipeline_mode<synchronous>, transform_indices = @transform_4, window_bounds = array<i64: 64, 32>}, {pipeline_mode = #tpu.pipeline_mode<synchronous>, transform_indices = @transform_5, window_bounds = array<i64: 64, 1>}, {transform_indices = @transform_6, window_bounds = array<i64: 2, 16, 32>}]} {
    %c0 = arith.constant 0 : index
    %c0_0 = arith.constant 0 : index
    %c0_1 = arith.constant 0 : index
    %0 = vector.load %arg1[%c0, %c0_0, %c0_1] : memref<2x16x256xf32, #tpu.memory_space<vmem>>, vector<2x16x256xf32>
    %1 = vector.shape_cast %0 : vector<2x16x256xf32> to vector<32x256xf32>
    %c0_2 = arith.constant 0 : index
    %c0_3 = arith.constant 0 : index
    %2 = vector.load %arg2[%c0_2, %c0_3] : memref<256x32xf32, #tpu.memory_space<vmem>>, vector<256x32xf32>
    %cst = arith.constant dense<0.000000e+00> : vector<32x32xf32>
    %3 = tpu.matmul %1, %2, %cst {dimension_numbers = #tpu.dot_dimension_numbers<[1], [0], [0], [1], [0, 0, 1, 1], [], []>} : vector<32x256xf32>, vector<256x32xf32>, vector<32x32xf32> -> vector<32x32xf32>
    %c0_4 = arith.constant 0 : index
    %c0_5 = arith.constant 0 : index
    %4 = vector.load %arg3[%c0_4, %c0_5] : memref<32x32xf32, #tpu.memory_space<vmem>>, vector<32x32xf32>
    %cst_6 = arith.constant dense<0.000000e+00> : vector<32x32xf32>
    %5 = tpu.matmul %4, %3, %cst_6 {dimension_numbers = #tpu.dot_dimension_numbers<[1], [0], [0], [1], [0, 0, 1, 1], [], []>} : vector<32x32xf32>, vector<32x32xf32>, vector<32x32xf32> -> vector<32x32xf32>
    %c0_7 = arith.constant 0 : index
    %c0_8 = arith.constant 0 : index
    %6 = vector.load %arg4[%c0_7, %c0_8] : memref<32x1xf32, #tpu.memory_space<vmem>>, vector<32x1xf32>
    %7 = vector.broadcast %6 : vector<32x1xf32> to vector<32x32xf32>
    %8 = arith.addf %5, %7 : vector<32x32xf32>
    %cst_9 = arith.constant 3.000000e+00 : f32
    %9 = vector.broadcast %cst_9 : f32 to vector<32x32xf32>
    %10 = arith.addf %8, %9 : vector<32x32xf32>
    %cst_10 = arith.constant 0.000000e+00 : f32
    %cst_11 = arith.constant 6.000000e+00 : f32
    %11 = vector.broadcast %cst_10 : f32 to vector<32x32xf32>
    %12 = arith.maximumf %11, %10 : vector<32x32xf32>
    %13 = vector.broadcast %cst_11 : f32 to vector<32x32xf32>
    %14 = arith.minimumf %13, %12 : vector<32x32xf32>
    %15 = arith.mulf %8, %14 : vector<32x32xf32>
    %cst_12 = arith.constant 0.166666672 : f32
    %16 = vector.broadcast %cst_12 : f32 to vector<32x32xf32>
    %17 = arith.mulf %15, %16 : vector<32x32xf32>
    %c0_13 = arith.constant 0 : index
    %c0_14 = arith.constant 0 : index
    %18 = vector.load %arg5[%c0_13, %c0_14] : memref<64x32xf32, #tpu.memory_space<vmem>>, vector<64x32xf32>
    %cst_15 = arith.constant dense<0.000000e+00> : vector<64x32xf32>
    %19 = tpu.matmul %18, %17, %cst_15 {dimension_numbers = #tpu.dot_dimension_numbers<[1], [0], [0], [1], [0, 0, 1, 1], [], []>} : vector<64x32xf32>, vector<32x32xf32>, vector<64x32xf32> -> vector<64x32xf32>
    %c0_16 = arith.constant 0 : index
    %c0_17 = arith.constant 0 : index
    %20 = vector.load %arg6[%c0_16, %c0_17] : memref<64x1xf32, #tpu.memory_space<vmem>>, vector<64x1xf32>
    %21 = vector.broadcast %20 : vector<64x1xf32> to vector<64x32xf32>
    %22 = arith.addf %19, %21 : vector<64x32xf32>
    %23 = vector.shape_cast %22 : vector<64x32xf32> to vector<2x32x32xf32>
    %24 = tpu.iota {dimensions = array<i32: 2>} : vector<2x16x32xi32>
    %c16_i32 = arith.constant 16 : i32
    %25 = vector.broadcast %c16_i32 : i32 to vector<2x16x32xi32>
    %26 = arith.cmpi slt, %24, %25 : vector<2x16x32xi32>
    %27 = vector.extract_strided_slice %23 {offsets = [0, 0, 0], sizes = [2, 16, 32], strides = [1, 1, 1]} : vector<2x32x32xf32> to vector<2x16x32xf32>
    %28 = vector.extract_strided_slice %23 {offsets = [0, 16, 0], sizes = [2, 16, 32], strides = [1, 1, 1]} : vector<2x32x32xf32> to vector<2x16x32xf32>
    %29 = arith.select %26, %27, %28 : vector<2x16x32xi1>, vector<2x16x32xf32>
    %c0_18 = arith.constant 0 : index
    %c0_19 = arith.constant 0 : index
    %c0_20 = arith.constant 0 : index
    %30 = vector.load %arg7[%c0_18, %c0_19, %c0_20] : memref<2x16x32xf32, #tpu.memory_space<vmem>>, vector<2x16x32xf32>
    tpu.vector_store %arg7[%c0_18, %c0_19, %c0_20], %29 {strides = array<i32>} : memref<2x16x32xf32, #tpu.memory_space<vmem>>, vector<2x16x32xf32>,
    return
  }
  func.func @transform_0(%arg0: i32) -> (i32, i32, i32) {
    %c0_i32 = arith.constant 0 : i32
    %c0_i32_0 = arith.constant 0 : i32
    %c0_i32_1 = arith.constant 0 : i32
    return %arg0, %c0_i32, %c0_i32_0 : i32, i32, i32
  }
  func.func @transform_1(%arg0: i32) -> (i32, i32) {
    %c0_i32 = arith.constant 0 : i32
    %c0_i32_0 = arith.constant 0 : i32
    %c0_i32_1 = arith.constant 0 : i32
    return %c0_i32, %c0_i32_0 : i32, i32
  }
  func.func @transform_2(%arg0: i32) -> (i32, i32) {
    %c0_i32 = arith.constant 0 : i32
    %c0_i32_0 = arith.constant 0 : i32
    %c0_i32_1 = arith.constant 0 : i32
    return %c0_i32, %c0_i32_0 : i32, i32
  }
  func.func @transform_3(%arg0: i32) -> (i32, i32) {
    %c0_i32 = arith.constant 0 : i32
    %c0_i32_0 = arith.constant 0 : i32
    %c0_i32_1 = arith.constant 0 : i32
    return %c0_i32, %c0_i32_0 : i32, i32
  }
  func.func @transform_4(%arg0: i32) -> (i32, i32) {
    %c0_i32 = arith.constant 0 : i32
    %c0_i32_0 = arith.constant 0 : i32
    %c0_i32_1 = arith.constant 0 : i32
    return %c0_i32, %c0_i32_0 : i32, i32
  }
  func.func @transform_5(%arg0: i32) -> (i32, i32) {
    %c0_i32 = arith.constant 0 : i32
    %c0_i32_0 = arith.constant 0 : i32
    %c0_i32_1 = arith.constant 0 : i32
    return %c0_i32, %c0_i32_0 : i32, i32
  }
  func.func @transform_6(%arg0: i32) -> (i32, i32, i32) {
    %c0_i32 = arith.constant 0 : i32
    %c0_i32_0 = arith.constant 0 : i32
    %c0_i32_1 = arith.constant 0 : i32
    return %arg0, %c0_i32, %c0_i32_0 : i32, i32, i32
  }
}

</mosaic_0001>

<llo_original>
// kernel: tpu_custom_call.1
$region0: #{tpu_custom_call.1}
  #allocation0 [shape = 'u32[]', space=smem, size = 0x4, offset = 0x4, fixed_abs, tag = 'smem constant byte address 0x4 - core index']
  #allocation1 [shape = 'u32[72,128]{1,0:T(1,128)}', space=vmem, size = 0x9000, scoped, tag = 'internal scratch']
  %s0 = inlined_call_operand.vmem [shape: f32[2,16,256], index: 0, kind: input, shape index: {}]
  %s1 = inlined_call_operand.vmem [shape: f32[256,32], index: 1, kind: input, shape index: {}]
  %s2 = inlined_call_operand.vmem [shape: f32[32,32], index: 2, kind: input, shape index: {}]
  %s3 = inlined_call_operand.vmem [shape: f32[32,1], index: 3, kind: input, shape index: {}]
  %s4 = inlined_call_operand.vmem [shape: f32[64,32], index: 4, kind: input, shape index: {}]
  %s5 = inlined_call_operand.vmem [shape: f32[64,1], index: 5, kind: input, shape index: {}]
  %s6 = inlined_call_operand.hbm [shape: f32[2,16,32], index: 6, kind: output, shape index: {}]
  %s7 = sld [smem:[#allocation0]]
  $region34: #{tpu_custom_call.1} parent=0
    _
  %s9 = ssub.s32 1, %s7
  %s10 = scalar_select 0, %s9, %s7
  $region1: #{tpu_custom_call.1} parent=0
    #allocation2 [shape = 'u8[16384]{0}', space=vmem, size = 0x4000, scoped, tag = 'output window, operand 0, single buffered']
    #allocation3 [shape = 's32[1]{0}', space=sflag, size = 0x4, scoped, tag = 'scoped memory for tpu_custom_call.1']
    %11 = vsyncpa [#allocation3], 0
    // Predicated region
    $region2: #{tpu_custom_call.1} parent=1 // pred_check
      _
    $region3: #{tpu_custom_call.1} parent=1 // pred_check_branch
      %13 = sbr.rel (0) target = $region5
    $region4: #{tpu_custom_call.1} parent=1 // pred_region
      _
    $region5: #{tpu_custom_call.1} parent=1 // pred_fallthru
      _
    // Predicated region
    $region6: #{tpu_custom_call.1} parent=1 // pred_check
      _
    $region7: #{tpu_custom_call.1} parent=1 // pred_check_branch
      %15 = sbr.rel (0) target = $region9
    $region8: #{tpu_custom_call.1} parent=1 // pred_region
      _
    $region9: #{tpu_custom_call.1} parent=1 // pred_fallthru
      _
    // Predicated region
    $region10: #{tpu_custom_call.1} parent=1 // pred_check
      _
    $region11: #{tpu_custom_call.1} parent=1 // pred_check_branch
      %17 = sbr.rel (0) target = $region13
    $region12: #{tpu_custom_call.1} parent=1 // pred_region
      _
    $region13: #{tpu_custom_call.1} parent=1 // pred_fallthru
      _
    // Predicated region
    $region14: #{tpu_custom_call.1} parent=1 // pred_check
      _
    $region15: #{tpu_custom_call.1} parent=1 // pred_check_branch
      %19 = sbr.rel (0) target = $region17
    $region16: #{tpu_custom_call.1} parent=1 // pred_region
      _
    $region17: #{tpu_custom_call.1} parent=1 // pred_fallthru
      _
    // Predicated region
    $region18: #{tpu_custom_call.1} parent=1 // pred_check
      _
    $region19: #{tpu_custom_call.1} parent=1 // pred_check_branch
      %21 = sbr.rel (0) target = $region21
    $region20: #{tpu_custom_call.1} parent=1 // pred_region
      _
    $region21: #{tpu_custom_call.1} parent=1 // pred_fallthru
      _
    // Predicated region
    $region22: #{tpu_custom_call.1} parent=1 // pred_check
      _
    $region23: #{tpu_custom_call.1} parent=1 // pred_check_branch
      %23 = sbr.rel (0) target = $region25
    $region24: #{tpu_custom_call.1} parent=1 // pred_region
      _
    $region25: #{tpu_custom_call.1} parent=1 // pred_fallthru
      _
    %v24 = vld [vmem:[%s0] sm:$0xff]
    %v25 = vld [vmem:[%s0 + $0x8] sm:$0xff]
    %v26 = vld [vmem:[%s0 + $0x10] sm:$0xff]
    %v27 = vld [vmem:[%s0 + $0x18] sm:$0xff]
    %v28 = vld [vmem:[%s0 + $0x20] sm:$0xff]
    %v29 = vld [vmem:[%s0 + $0x28] sm:$0xff]
    %v30 = vld [vmem:[%s0 + $0x30] sm:$0xff]
    %v31 = vld [vmem:[%s0 + $0x38] sm:$0xff]
    %v32 = vld [vmem:[%s1] sm:$0xff]
    %v33 = vld [vmem:[%s1 + $0x8] sm:$0xff]
    %v34 = vld [vmem:[%s1 + $0x10] sm:$0xff]
    %v35 = vld [vmem:[%s1 + $0x18] sm:$0xff]
    %v36 = vld [vmem:[%s1 + $0x20] sm:$0xff]
    %v37 = vld [vmem:[%s1 + $0x28] sm:$0xff]
    %v38 = vld [vmem:[%s1 + $0x30] sm:$0xff]
    %v39 = vld [vmem:[%s1 + $0x38] sm:$0xff]
    %v40 = vld [vmem:[%s1 + $0x40] sm:$0xff]
    %v41 = vld [vmem:[%s1 + $0x48] sm:$0xff]
    %v42 = vld [vmem:[%s1 + $0x50] sm:$0xff]
    %v43 = vld [vmem:[%s1 + $0x58] sm:$0xff]
    %v44 = vld [vmem:[%s1 + $0x60] sm:$0xff]
    %v45 = vld [vmem:[%s1 + $0x68] sm:$0xff]
    %v46 = vld [vmem:[%s1 + $0x70] sm:$0xff]
    %v47 = vld [vmem:[%s1 + $0x78] sm:$0xff]
    %v48 = vld [vmem:[%s1 + $0x80] sm:$0xff]
    %v49 = vld [vmem:[%s1 + $0x88] sm:$0xff]
    %v50 = vld [vmem:[%s1 + $0x90] sm:$0xff]
    %v51 = vld [vmem:[%s1 + $0x98] sm:$0xff]
    %v52 = vld [vmem:[%s1 + $0xa0] sm:$0xff]
    %v53 = vld [vmem:[%s1 + $0xa8] sm:$0xff]
    %v54 = vld [vmem:[%s1 + $0xb0] sm:$0xff]
    %v55 = vld [vmem:[%s1 + $0xb8] sm:$0xff]
    %v56 = vld [vmem:[%s1 + $0xc0] sm:$0xff]
    %v57 = vld [vmem:[%s1 + $0xc8] sm:$0xff]
    %v58 = vld [vmem:[%s1 + $0xd0] sm:$0xff]
    %v59 = vld [vmem:[%s1 + $0xd8] sm:$0xff]
    %v60 = vld [vmem:[%s1 + $0xe0] sm:$0xff]
    %v61 = vld [vmem:[%s1 + $0xe8] sm:$0xff]
    %v62 = vld [vmem:[%s1 + $0xf0] sm:$0xff]
    %v63 = vld [vmem:[%s1 + $0xf8] sm:$0xff]
    %64 = vmatpush.msra.mxu0 %v47
    %65 = vmatpush.msra.mxu0 %v46
    %66 = vmatpush.msra.mxu0 %v45
    %67 = vmatpush.msra.mxu0 %v44
    %68 = vmatpush.msra.mxu0 %v43
    %69 = vmatpush.msra.mxu0 %v42
    %70 = vmatpush.msra.mxu0 %v41
    %71 = vmatpush.msra.mxu0 %v40
    %72 = vmatpush.msra.mxu0 %v39
    %73 = vmatpush.msra.mxu0 %v38
    %74 = vmatpush.msra.mxu0 %v37
    %75 = vmatpush.msra.mxu0 %v36
    %76 = vmatpush.msra.mxu0 %v35
    %77 = vmatpush.msra.mxu0 %v34
    %78 = vmatpush.msra.mxu0 %v33
    %79 = vmatpush.msra.mxu0 %v32
    %80 = vmatmul.f32.gmra.mxu0 %v24
    %v81 = vpop.f32.mrf.mxu0
    %v82 = vadd.f32 0.0, %v81
    %83 = vmatmul.f32.gmra.mxu0 %v26
    %v84 = vpop.f32.mrf.mxu0
    %v85 = vadd.f32 0.0, %v84
    %86 = vmatmul.f32.gmra.mxu0 %v28
    %v87 = vpop.f32.mrf.mxu0
    %v88 = vadd.f32 0.0, %v87
    %89 = vmatmul.f32.gmra.mxu0 %v30
    %v90 = vpop.f32.mrf.mxu0
    %v91 = vadd.f32 0.0, %v90
    %92 = vdwg.mxu0
    %93 = vmatpush.msra.mxu0 %v63
    %94 = vmatpush.msra.mxu0 %v62
    %95 = vmatpush.msra.mxu0 %v61
    %96 = vmatpush.msra.mxu0 %v60
    %97 = vmatpush.msra.mxu0 %v59
    %98 = vmatpush.msra.mxu0 %v58
    %99 = vmatpush.msra.mxu0 %v57
    %100 = vmatpush.msra.mxu0 %v56
    %101 = vmatpush.msra.mxu0 %v55
    %102 = vmatpush.msra.mxu0 %v54
    %103 = vmatpush.msra.mxu0 %v53
    %104 = vmatpush.msra.mxu0 %v52
    %105 = vmatpush.msra.mxu0 %v51
    %106 = vmatpush.msra.mxu0 %v50
    %107 = vmatpush.msra.mxu0 %v49
    %108 = vmatpush.msra.mxu0 %v48
    %109 = vmatmul.f32.gmra.mxu0 %v25
    %v110 = vpop.f32.mrf.mxu0
    %v111 = vadd.f32 %v82, %v110
    %112 = vmatmul.f32.gmra.mxu0 %v27
    %v113 = vpop.f32.mrf.mxu0
    %v114 = vadd.f32 %v85, %v113
    %115 = vmatmul.f32.gmra.mxu0 %v29
    %v116 = vpop.f32.mrf.mxu0
    %v117 = vadd.f32 %v88, %v116
    %118 = vmatmul.f32.gmra.mxu0 %v31
    %v119 = vpop.f32.mrf.mxu0
    %v120 = vadd.f32 %v91, %v119
    %121 = vdwg.mxu0
    %v122 = vld [vmem:[%s2] sm:$0xff]
    %v123 = vld [vmem:[%s2 + $0x8] sm:$0xff]
    %v124 = vld [vmem:[%s2 + $0x10] sm:$0xff]
    %v125 = vld [vmem:[%s2 + $0x18] sm:$0xff]
    %v126 = vld [vmem:[%s3] sm:$0xff]
    %v127 = vld [vmem:[%s3 + $0x8] sm:$0xff]
    %v128 = vld [vmem:[%s3 + $0x10] sm:$0xff]
    %v129 = vld [vmem:[%s3 + $0x18] sm:$0xff]
    %131 = vset.pattern.permute.xlu0 0
    %132 = vperm.xlu0 %131, %v126
    %v133 = vpop.permute.xlu0 %132
    %136 = vset.pattern.permute.xlu0 0
    %137 = vperm.xlu0 %136, %v127
    %v138 = vpop.permute.xlu0 %137
    %141 = vset.pattern.permute.xlu0 0
    %142 = vperm.xlu0 %141, %v128
    %v143 = vpop.permute.xlu0 %142
    %146 = vset.pattern.permute.xlu0 0
    %147 = vperm.xlu0 %146, %v129
    %v148 = vpop.permute.xlu0 %147
    %vm150 = vcmask 261120
    %v152 = vsel %vm150, %v122, 0
    %v155 = vsel %vm150, %v123, 0
    %v158 = vsel %vm150, %v124, 0
    %v161 = vsel %vm150, %v125, 0
    %163 = vmatpush.msra.mxu0 0.0
    %164 = vmatpush.msra.mxu0 0.0
    %165 = vmatpush.msra.mxu0 0.0
    %166 = vmatpush.msra.mxu0 0.0
    %167 = vmatpush.msra.mxu0 0.0
    %168 = vmatpush.msra.mxu0 0.0
    %169 = vmatpush.msra.mxu0 0.0
    %170 = vmatpush.msra.mxu0 0.0
    %171 = vmatpush.msra.mxu0 0.0
    %172 = vmatpush.msra.mxu0 0.0
    %173 = vmatpush.msra.mxu0 0.0
    %174 = vmatpush.msra.mxu0 0.0
    %175 = vmatpush.msra.mxu0 %v120
    %176 = vmatpush.msra.mxu0 %v117
    %177 = vmatpush.msra.mxu0 %v114
    %178 = vmatpush.msra.mxu0 %v111
    %179 = vmatmul.f32.gmra.mxu0 %v152
    %v180 = vpop.f32.mrf.mxu0
    %v181 = vadd.f32 %v133, %v180
    %182 = vmatmul.f32.gmra.mxu0 %v155
    %v183 = vpop.f32.mrf.mxu0
    %v184 = vadd.f32 %v138, %v183
    %185 = vmatmul.f32.gmra.mxu0 %v158
    %v186 = vpop.f32.mrf.mxu0
    %v187 = vadd.f32 %v143, %v186
    %188 = vmatmul.f32.gmra.mxu0 %v161
    %v189 = vpop.f32.mrf.mxu0
    %v190 = vadd.f32 %v148, %v189
    %191 = vdwg.mxu0
    %v192 = vadd.f32 %v181, 3.0
    %v193 = vadd.f32 %v184, 3.0
    %v194 = vadd.f32 %v187, 3.0
    %v195 = vadd.f32 %v190, 3.0
    %v196 = vmax.f32 %v192, 0.0
    %v197 = vmax.f32 %v193, 0.0
    %v198 = vmax.f32 %v194, 0.0
    %v199 = vmax.f32 %v195, 0.0
    %v200 = vmin.f32 %v196, 6.0
    %v201 = vmin.f32 %v197, 6.0
    %v202 = vmin.f32 %v198, 6.0
    %v203 = vmin.f32 %v199, 6.0
    %v204 = vmul.f32 %v181, %v200
    %v205 = vmul.f32 %v184, %v201
    %v206 = vmul.f32 %v187, %v202
    %v207 = vmul.f32 %v190, %v203
    %v208 = vmul.f32 %v204, 0.16666667
    %v209 = vmul.f32 %v205, 0.16666667
    %v210 = vmul.f32 %v206, 0.16666667
    %v211 = vmul.f32 %v207, 0.16666667
    %v212 = vld [vmem:[%s4] sm:$0xff]
    %v213 = vld [vmem:[%s4 + $0x8] sm:$0xff]
    %v214 = vld [vmem:[%s4 + $0x10] sm:$0xff]
    %v215 = vld [vmem:[%s4 + $0x18] sm:$0xff]
    %v216 = vld [vmem:[%s4 + $0x20] sm:$0xff]
    %v217 = vld [vmem:[%s4 + $0x28] sm:$0xff]
    %v218 = vld [vmem:[%s4 + $0x30] sm:$0xff]
    %v219 = vld [vmem:[%s4 + $0x38] sm:$0xff]
    %v220 = vld [vmem:[%s5] sm:$0xff]
    %v221 = vld [vmem:[%s5 + $0x8] sm:$0xff]
    %v222 = vld [vmem:[%s5 + $0x10] sm:$0xff]
    %v223 = vld [vmem:[%s5 + $0x18] sm:$0xff]
    %v224 = vld [vmem:[%s5 + $0x20] sm:$0xff]
    %v225 = vld [vmem:[%s5 + $0x28] sm:$0xff]
    %v226 = vld [vmem:[%s5 + $0x30] sm:$0xff]
    %v227 = vld [vmem:[%s5 + $0x38] sm:$0xff]
    %229 = vset.pattern.permute.xlu0 0
    %230 = vperm.xlu0 %229, %v220
    %v231 = vpop.permute.xlu0 %230
    %234 = vset.pattern.permute.xlu0 0
    %235 = vperm.xlu0 %234, %v221
    %v236 = vpop.permute.xlu0 %235
    %239 = vset.pattern.permute.xlu0 0
    %240 = vperm.xlu0 %239, %v222
    %v241 = vpop.permute.xlu0 %240
    %244 = vset.pattern.permute.xlu0 0
    %245 = vperm.xlu0 %244, %v223
    %v246 = vpop.permute.xlu0 %245
    %249 = vset.pattern.permute.xlu0 0
    %250 = vperm.xlu0 %249, %v224
    %v251 = vpop.permute.xlu0 %250
    %254 = vset.pattern.permute.xlu0 0
    %255 = vperm.xlu0 %254, %v225
    %v256 = vpop.permute.xlu0 %255
    %259 = vset.pattern.permute.xlu0 0
    %260 = vperm.xlu0 %259, %v226
    %v261 = vpop.permute.xlu0 %260
    %264 = vset.pattern.permute.xlu0 0
    %265 = vperm.xlu0 %264, %v227
    %v266 = vpop.permute.xlu0 %265
    %v269 = vsel %vm150, %v212, 0
    %v272 = vsel %vm150, %v213, 0
    %v275 = vsel %vm150, %v214, 0
    %v278 = vsel %vm150, %v215, 0
    %v281 = vsel %vm150, %v216, 0
    %v284 = vsel %vm150, %v217, 0
    %v287 = vsel %vm150, %v218, 0
    %v290 = vsel %vm150, %v219, 0
    %292 = vmatpush.msra.mxu0 0.0
    %293 = vmatpush.msra.mxu0 0.0
    %294 = vmatpush.msra.mxu0 0.0
    %295 = vmatpush.msra.mxu0 0.0
    %296 = vmatpush.msra.mxu0 0.0
    %297 = vmatpush.msra.mxu0 0.0
    %298 = vmatpush.msra.mxu0 0.0
    %299 = vmatpush.msra.mxu0 0.0
    %300 = vmatpush.msra.mxu0 0.0
    %301 = vmatpush.msra.mxu0 0.0
    %302 = vmatpush.msra.mxu0 0.0
    %303 = vmatpush.msra.mxu0 0.0
    %304 = vmatpush.msra.mxu0 %v211
    %305 = vmatpush.msra.mxu0 %v210
    %306 = vmatpush.msra.mxu0 %v209
    %307 = vmatpush.msra.mxu0 %v208
    %308 = vmatmul.f32.gmra.mxu0 %v269
    %v309 = vpop.f32.mrf.mxu0
    %v310 = vadd.f32 %v231, %v309
    %311 = vmatmul.f32.gmra.mxu0 %v272
    %v312 = vpop.f32.mrf.mxu0
    %v313 = vadd.f32 %v236, %v312
    %314 = vmatmul.f32.gmra.mxu0 %v275
    %v315 = vpop.f32.mrf.mxu0
    %v316 = vadd.f32 %v241, %v315
    %317 = vmatmul.f32.gmra.mxu0 %v278
    %v318 = vpop.f32.mrf.mxu0
    %v319 = vadd.f32 %v246, %v318
    %320 = vmatmul.f32.gmra.mxu0 %v281
    %v321 = vpop.f32.mrf.mxu0
    %v322 = vadd.f32 %v251, %v321
    %323 = vmatmul.f32.gmra.mxu0 %v284
    %v324 = vpop.f32.mrf.mxu0
    %v325 = vadd.f32 %v256, %v324
    %326 = vmatmul.f32.gmra.mxu0 %v287
    %v327 = vpop.f32.mrf.mxu0
    %v328 = vadd.f32 %v261, %v327
    %329 = vmatmul.f32.gmra.mxu0 %v290
    %v330 = vpop.f32.mrf.mxu0
    %v331 = vadd.f32 %v266, %v330
    %332 = vdwg.mxu0
    %v333 = vlaneseq
    %v334 = vand.u32 %v333, 127
    %vm335 = vcmp.lt.s32.totalorder %v334, 16
    %v336 = vsel %vm335, %v310, %v316
    %v337 = vsel %vm335, %v313, %v319
    %v338 = vsel %vm335, %v322, %v328
    %v339 = vsel %vm335, %v325, %v331
    %340 = vst.msk [vmem:[#allocation2] sm:$0xff] %vm150, %v336
    %341 = vst.msk [vmem:[#allocation2 + $0x8] sm:$0xff] %vm150, %v337
    %342 = vst.msk [vmem:[#allocation2 + $0x10] sm:$0xff] %vm150, %v338
    %343 = vst.msk [vmem:[#allocation2 + $0x18] sm:$0xff] %vm150, %v339
    // Predicated region
    $region26: #{tpu_custom_call.1} parent=1 // pred_check
      _
    $region27: #{tpu_custom_call.1} parent=1 // pred_check_branch
      %345 = sbr.rel (0) target = $region29
    $region28: #{tpu_custom_call.1} parent=1 // pred_region
      %347 = vsyncadd [#allocation3], 0
      %s348 = sshll.u32 [#allocation2], 4
      %s349 = int_to_ptr.vmem [resolvable:$true] %s348
      %s350 = sshll.u32 %s6, 4
      %s351 = int_to_ptr.hbm [resolvable:$true] %s350
      %356 = dma.vmem_to_hbm [thread:$0]  %s349, 512, %s351, [#allocation3], 128, 128, 8
    $region29: #{tpu_custom_call.1} parent=1 // pred_fallthru
      _
    // Predicated region
    $region30: #{tpu_custom_call.1} parent=1 // pred_check
      _
    $region31: #{tpu_custom_call.1} parent=1 // pred_check_branch
      %358 = sbr.rel (0) target = $region33
    $region32: #{tpu_custom_call.1} parent=1 // pred_region
      %360 = dma.done [#allocation3], 512
    $region33: #{tpu_custom_call.1} parent=1 // pred_fallthru
      _
    %361 = vsyncpa [#allocation3], 1

</llo_original>
